<compile_context>
chip_gen: v7x
topology: tpu7x:2x2x1
jax: 0.10.0
libtpu: 0.0.40
codegen_flags: <defaults>
</compile_context>

<pallas_src>
import functools

import jax
import jax.numpy as jnp
from jax import lax
from jax.experimental import pallas as pl
from jax.experimental.pallas import tpu as pltpu

NUM_BINS = 32
MINVAL = 0.0
MAXVAL = 1.0
SIGMA_RATIO = 1.0


def _round_up(x, m):
    return -(-x // m) * m


def _mi_kernel(yt_ref, yp_ref, out_ref, pab_acc, *,
               preterm, bin_step, minval, max_clip, inv_n_voxels, n_valid,
               num_bins, sub_n, n_sub, tile_n, need_mask, compute_dtype):
    c = pl.program_id(1)

    @pl.when(c == 0)
    def _():
        pab_acc[...] = jnp.zeros_like(pab_acc)

    # Bin centers generated in-kernel (no extra input / per-step DMA),
    # bins on the SUBLANE axis: shape (num_bins, 1).  Hoisted out of the loop.
    vbc = (lax.broadcasted_iota(jnp.int32, (num_bins, 1), 0).astype(jnp.float32)
           * bin_step + minval)

    def soft_bin(v):
        # v: (1, sub_n) f32 voxels on lanes -> (num_bins, sub_n) memberships.
        d = v - vbc                                     # f32, VPU (not binding)
        arg = (-preterm) * d * d                        # f32 exp argument
        w = jnp.exp(arg.astype(compute_dtype))          # EUP: bf16 on v6e/v7x, f32 on v5e
        s = jnp.sum(w.astype(jnp.float32), axis=0, keepdims=True)   # f32 accumulate
        inv = pl.reciprocal(s, approx=True)             # one reciprocal per voxel column
        return w * inv.astype(compute_dtype)            # (num_bins, sub_n)

    dn_nt = (((1,), (1,)), ((), ()))                    # contract lane axes: A @ B^T

    def body(s_i, pab):
        start = pl.multiple_of(s_i * sub_n, 128)
        sl = pl.ds(start, sub_n)
        # Lower clip bound is 0.0 (matches the PyTorch module), minval only
        # positions the bin centers.
        yt = jnp.clip(yt_ref[0, 0, :, sl].astype(jnp.float32), 0.0, max_clip)
        yp = jnp.clip(yp_ref[0, 0, :, sl].astype(jnp.float32), 0.0, max_clip)

        ia = soft_bin(yt)                               # (num_bins, sub_n)
        ib = soft_bin(yp)                               # (num_bins, sub_n)

        if need_mask:
            # Zero I_a rows of padded voxels; since pa/pb are derived from pab
            # row/col sums, masking I_a alone removes padded voxels everywhere.
            gidx = (c * tile_n + start
                    + lax.broadcasted_iota(jnp.int32, (1, sub_n), 1))
            ia = jnp.where(gidx < n_valid, ia, jnp.zeros_like(ia))

        # Joint histogram on the MXU: bf16 operands, register-carried f32 acc.
        return pab + lax.dot_general(
            ia.astype(jnp.bfloat16), ib.astype(jnp.bfloat16), dn_nt,
            preferred_element_type=jnp.float32)         # (num_bins, num_bins)

    pab = lax.fori_loop(0, n_sub, body,
                        jnp.zeros((num_bins, num_bins), jnp.float32),
                        unroll=2)
    pab_acc[...] += pab                                  # one VMEM RMW per grid step

    @pl.when(c == pl.num_programs(1) - 1)
    def _():
        pab_f = pab_acc[...] * inv_n_voxels             # (nb, nb)
        pa = jnp.sum(pab_f, axis=1, keepdims=True)      # (nb, 1) marginal = row sums
        pb = jnp.sum(pab_f, axis=0, keepdims=True)      # (1, nb) marginal = col sums
        papb = pa * pb + 1e-6                           # outer product via broadcast
        contrib = pab_f * jnp.log(pab_f / papb + 1e-6)
        # Reduce one bin axis in-kernel; the remaining 32-element sum is glue.
        out_ref[0] = jnp.sum(contrib, axis=0, keepdims=True)   # (1, nb)


def _pick_compute_dtype():
    # bf16 EUP/VPU exist on v6e / v7x; keep f32 on v5e and older (review item).
    try:
        kind = jax.devices()[0].device_kind.lower()
    except Exception:  # pragma: no cover
        kind = ""
    if any(tag in kind for tag in ("v6", "v7", "7x")):
        return jnp.bfloat16
    return jnp.float32


def mutual_information_loss(y_true, y_pred, *, num_bins=NUM_BINS,
                            minval=MINVAL, maxval=MAXVAL,
                            sigma_ratio=SIGMA_RATIO,
                            tile_n=32768, sub_n=None, compute_dtype=None):
    """Equivalent of MutualInformation().forward(y_true, y_pred)."""
    bin_step = (maxval - minval) / (num_bins - 1)        # mean(diff(bin_centers))
    sigma = bin_step * sigma_ratio
    preterm = 1.0 / (2.0 * sigma ** 2)

    if compute_dtype is None:
        compute_dtype = _pick_compute_dtype()
    is_bf16 = jnp.dtype(compute_dtype) == jnp.dtype(jnp.bfloat16)
    if sub_n is None:
        sub_n = 1024 if is_bf16 else 512                 # longer K per MXU call on bf16

    B = y_true.shape[0]
    yt = y_true.reshape(B, -1)                           # original dtype; cast in-kernel
    yp = y_pred.reshape(B, -1)
    N = yt.shape[1]

    # Tiling: sub_n multiple of 128; tile_n multiple of sub_n; pad N up to a
    # multiple of tile_n (padded voxels are masked out inside the kernel).
    sub_n = max(128, (sub_n // 128) * 128)
    tile_n = max(sub_n, (tile_n // sub_n) * sub_n)
    tile_n = min(tile_n, _round_up(N, sub_n))
    N_pad = _round_up(N, tile_n)
    n_chunks = N_pad // tile_n
    n_sub = tile_n // sub_n
    need_mask = (N_pad != N)

    if need_mask:
        pad = N_pad - N
        yt = jnp.pad(yt, ((0, 0), (0, pad)))
        yp = jnp.pad(yp, ((0, 0), (0, pad)))

    # (B, n_chunks, 1, tile_n): block (1,1,1,tile_n) -> last two block dims
    # equal the full array dims (lane-dense, layout-rule safe for any n_chunks).
    yt4 = yt.reshape(B, n_chunks, 1, tile_n)
    yp4 = yp.reshape(B, n_chunks, 1, tile_n)

    kernel = functools.partial(
        _mi_kernel, preterm=float(preterm), bin_step=float(bin_step),
        minval=float(minval), max_clip=float(maxval),
        inv_n_voxels=1.0 / float(N), n_valid=int(N),
        num_bins=num_bins, sub_n=sub_n, n_sub=n_sub, tile_n=tile_n,
        need_mask=need_mask, compute_dtype=compute_dtype)

    itemsize = jnp.dtype(yt4.dtype).itemsize
    cost = pl.CostEstimate(
        flops=2 * num_bins * num_bins * N_pad * B,       # joint-histogram matmuls
        transcendentals=2 * num_bins * N_pad * B,        # the exp calls (binding unit)
        bytes_accessed=2 * N_pad * itemsize * B)

    out = pl.pallas_call(
        kernel,
        out_shape=jax.ShapeDtypeStruct((B, 1, num_bins), jnp.float32),
        grid_spec=pltpu.PrefetchScalarGridSpec(
            num_scalar_prefetch=0,
            grid=(B, n_chunks),                          # reduction axis last
            in_specs=[
                pl.BlockSpec((1, 1, 1, tile_n), lambda b, c: (b, c, 0, 0)),
                pl.BlockSpec((1, 1, 1, tile_n), lambda b, c: (b, c, 0, 0)),
            ],
            out_specs=pl.BlockSpec((1, 1, num_bins), lambda b, c: (b, 0, 0)),
            scratch_shapes=[
                pltpu.VMEM((num_bins, num_bins), jnp.float32),  # pab accumulator
            ],
        ),
        compiler_params=pltpu.CompilerParams(
            dimension_semantics=("parallel", "arbitrary")),     # batch across cores
        cost_estimate=cost,
    )(yt4, yp4)

    mi_per_batch = jnp.sum(out, axis=(1, 2))             # tiny final reduction (glue)
    return -jnp.mean(mi_per_batch)


def _mi_reference(y_true, y_pred, *, num_bins=NUM_BINS, minval=MINVAL,
                  maxval=MAXVAL, sigma_ratio=SIGMA_RATIO):
    """Pure-JAX f32 reference mirroring the PyTorch module."""
    bin_centers = jnp.linspace(minval, maxval, num_bins, dtype=jnp.float32)
    sigma = (maxval - minval) / (num_bins - 1) * sigma_ratio
    preterm = 1.0 / (2.0 * sigma ** 2)

    B = y_true.shape[0]
    yt = jnp.clip(y_true.reshape(B, -1).astype(jnp.float32), 0.0, maxval)[..., None]
    yp = jnp.clip(y_pred.reshape(B, -1).astype(jnp.float32), 0.0, maxval)[..., None]
    N = yt.shape[1]
    vbc = bin_centers.reshape(1, 1, num_bins)
    ia = jnp.exp(-preterm * (yt - vbc) ** 2)
    ia = ia / jnp.sum(ia, axis=-1, keepdims=True)
    ib = jnp.exp(-preterm * (yp - vbc) ** 2)
    ib = ib / jnp.sum(ib, axis=-1, keepdims=True)
    pab = jnp.einsum('bnk,bnl->bkl', ia, ib) / N
    pa = jnp.mean(ia, axis=1, keepdims=True)
    pb = jnp.mean(ib, axis=1, keepdims=True)
    papb = jnp.einsum('bok,bol->bkl', pa, pb) + 1e-6
    mi = jnp.sum(pab * jnp.log(pab / papb + 1e-6), axis=(1, 2))
    return -jnp.mean(mi)


if __name__ == "__main__":
    key = jax.random.PRNGKey(0)
    k1, k2 = jax.random.split(key)
    shape = (2, 4, 16, 16)   # NCHW, as the PyTorch module would receive
    y_true = jax.random.uniform(k1, shape, dtype=jnp.float32)
    y_pred = jax.random.uniform(k2, shape, dtype=jnp.float32)

    loss = jax.block_until_ready(mutual_information_loss(y_true, y_pred))
    ref = jax.block_until_ready(_mi_reference(y_true, y_pred))

    # bf16 exp (on v6e/v7x), bf16 MXU operands and approx reciprocal give
    # ~0.5% membership error -> a few-percent deviation on the MI value.
    assert jnp.isfinite(loss), float(loss)
    assert jnp.allclose(loss, ref, rtol=5e-2, atol=1e-2), (float(loss), float(ref))
    print("KERNEL_OK")
</pallas_src>

<mosaic_0001>
module attributes {stable_mosaic.version = 11 : i64} {
  func.func @_mi_kernel(%arg0: i32, %arg1: i32, %arg2: memref<1x1x1x1024xf32, #tpu.memory_space<vmem>>, %arg3: memref<1x1x1x1024xf32, #tpu.memory_space<vmem>>, %arg4: memref<1x1x32xf32, #tpu.memory_space<vmem>>, %arg5: memref<32x32xf32, #tpu.memory_space<vmem>>) attributes {dimension_semantics = [#tpu.dimension_semantics<parallel>, #tpu.dimension_semantics<arbitrary>], iteration_bounds = array<i64: 2, 1>, scalar_prefetch = 0 : i64, scratch_operands = 1 : i64, tpu.core_type = #tpu.core_type<tc>, window_params = [{transform_indices = @transform_0, window_bounds = array<i64: 1, 1, 1, 1024>}, {transform_indices = @transform_1, window_bounds = array<i64: 1, 1, 1, 1024>}, {transform_indices = @transform_2, window_bounds = array<i64: 1, 1, 32>}]} {
    %c0_i32 = arith.constant 0 : i32
    %0 = arith.cmpi eq, %arg1, %c0_i32 : i32
    %1 = arith.extui %0 : i1 to i32
    %c0_i32_0 = arith.constant 0 : i32
    %2 = arith.cmpi ne, %1, %c0_i32_0 : i32
    scf.if %2 {
      %cst_40 = arith.constant 0.000000e+00 : f32
      %104 = vector.broadcast %cst_40 : f32 to vector<32x32xf32>
      %c0_41 = arith.constant 0 : index
      %c0_42 = arith.constant 0 : index
      %105 = vector.load %arg5[%c0_41, %c0_42] : memref<32x32xf32, #tpu.memory_space<vmem>>, vector<32x32xf32>
      tpu.vector_store %arg5[%c0_41, %c0_42], %104 {strides = array<i32>} : memref<32x32xf32, #tpu.memory_space<vmem>>, vector<32x32xf32>,
    } else {
    }
    %3 = tpu.iota {dimensions = array<i32: 0>} : vector<32x1xi32>
    %4 = arith.sitofp %3 : vector<32x1xi32> to vector<32x1xf32>
    %cst = arith.constant 0.0322580636 : f32
    %5 = vector.broadcast %cst : f32 to vector<32x1xf32>
    %6 = arith.mulf %4, %5 : vector<32x1xf32>
    %cst_1 = arith.constant 0.000000e+00 : f32
    %7 = vector.broadcast %cst_1 : f32 to vector<32x1xf32>
    %8 = arith.addf %6, %7 : vector<32x1xf32>
    %cst_2 = arith.constant 0.000000e+00 : f32
    %9 = vector.broadcast %cst_2 : f32 to vector<32x32xf32>
    %c0_i32_3 = arith.constant 0 : i32
    %c512_i32 = arith.constant 512 : i32
    %10 = arith.muli %c0_i32_3, %c512_i32 : i32
    %11 = tpu.assume_multiple %10, 128 : i32
    %c0 = arith.constant 0 : index
    %c0_4 = arith.constant 0 : index
    %c0_5 = arith.constant 0 : index
    %12 = arith.index_cast %11 : i32 to index
    %13 = vector.load %arg2[%c0, %c0_4, %c0_5, %12] : memref<1x1x1x1024xf32, #tpu.memory_space<vmem>>, vector<1x1x1x512xf32>
    %14 = vector.shape_cast %13 : vector<1x1x1x512xf32> to vector<1x512xf32>
    %cst_6 = arith.constant 0.000000e+00 : f32
    %cst_7 = arith.constant 1.000000e+00 : f32
    %15 = vector.broadcast %cst_6 : f32 to vector<1x512xf32>
    %16 = arith.maximumf %15, %14 : vector<1x512xf32>
    %17 = vector.broadcast %cst_7 : f32 to vector<1x512xf32>
    %18 = arith.minimumf %17, %16 : vector<1x512xf32>
    %c0_8 = arith.constant 0 : index
    %c0_9 = arith.constant 0 : index
    %c0_10 = arith.constant 0 : index
    %19 = arith.index_cast %11 : i32 to index
    %20 = vector.load %arg3[%c0_8, %c0_9, %c0_10, %19] : memref<1x1x1x1024xf32, #tpu.memory_space<vmem>>, vector<1x1x1x512xf32>
    %21 = vector.shape_cast %20 : vector<1x1x1x512xf32> to vector<1x512xf32>
    %cst_11 = arith.constant 0.000000e+00 : f32
    %cst_12 = arith.constant 1.000000e+00 : f32
    %22 = vector.broadcast %cst_11 : f32 to vector<1x512xf32>
    %23 = arith.maximumf %22, %21 : vector<1x512xf32>
    %24 = vector.broadcast %cst_12 : f32 to vector<1x512xf32>
    %25 = arith.minimumf %24, %23 : vector<1x512xf32>
    %26 = vector.broadcast %18 : vector<1x512xf32> to vector<32x512xf32>
    %27 = vector.broadcast %8 : vector<32x1xf32> to vector<32x512xf32>
    %28 = arith.subf %26, %27 : vector<32x512xf32>
    %cst_13 = arith.constant -4.805000e+02 : f32
    %29 = vector.broadcast %cst_13 : f32 to vector<32x512xf32>
    %30 = arith.mulf %29, %28 : vector<32x512xf32>
    %31 = arith.mulf %30, %28 : vector<32x512xf32>
    %32 = math.exp %31 : vector<32x512xf32>
    %cst_14 = arith.constant dense<0.000000e+00> : vector<512xf32>
    %33 = vector.multi_reduction <add>, %32, %cst_14 [0] : vector<32x512xf32> to vector<512xf32>
    %34 = vector.shape_cast %33 : vector<512xf32> to vector<1x512xf32>
    %35 = tpu.reciprocal %34 {approx = true} : vector<1x512xf32> -> vector<1x512xf32>
    %36 = vector.broadcast %35 : vector<1x512xf32> to vector<32x512xf32>
    %37 = arith.mulf %32, %36 : vector<32x512xf32>
    %38 = vector.broadcast %25 : vector<1x512xf32> to vector<32x512xf32>
    %39 = vector.broadcast %8 : vector<32x1xf32> to vector<32x512xf32>
    %40 = arith.subf %38, %39 : vector<32x512xf32>
    %cst_15 = arith.constant -4.805000e+02 : f32
    %41 = vector.broadcast %cst_15 : f32 to vector<32x512xf32>
    %42 = arith.mulf %41, %40 : vector<32x512xf32>
    %43 = arith.mulf %42, %40 : vector<32x512xf32>
    %44 = math.exp %43 : vector<32x512xf32>
    %cst_16 = arith.constant dense<0.000000e+00> : vector<512xf32>
    %45 = vector.multi_reduction <add>, %44, %cst_16 [0] : vector<32x512xf32> to vector<512xf32>
    %46 = vector.shape_cast %45 : vector<512xf32> to vector<1x512xf32>
    %47 = tpu.reciprocal %46 {approx = true} : vector<1x512xf32> -> vector<1x512xf32>
    %48 = vector.broadcast %47 : vector<1x512xf32> to vector<32x512xf32>
    %49 = arith.mulf %44, %48 : vector<32x512xf32>
    %50 = arith.truncf %37 : vector<32x512xf32> to vector<32x512xbf16>
    %51 = arith.truncf %49 : vector<32x512xf32> to vector<32x512xbf16>
    %cst_17 = arith.constant dense<0.000000e+00> : vector<32x32xf32>
    %52 = tpu.matmul %50, %51, %cst_17 {dimension_numbers = #tpu.dot_dimension_numbers<[1], [1], [0], [0], [0, 0, 1, 0], [], []>} : vector<32x512xbf16>, vector<32x512xbf16>, vector<32x32xf32> -> vector<32x32xf32>
    %53 = arith.addf %9, %52 : vector<32x32xf32>
    %c1_i32 = arith.constant 1 : i32
    %c512_i32_18 = arith.constant 512 : i32
    %54 = arith.muli %c1_i32, %c512_i32_18 : i32
    %55 = tpu.assume_multiple %54, 128 : i32
    %c0_19 = arith.constant 0 : index
    %c0_20 = arith.constant 0 : index
    %c0_21 = arith.constant 0 : index
    %56 = arith.index_cast %55 : i32 to index
    %57 = vector.load %arg2[%c0_19, %c0_20, %c0_21, %56] : memref<1x1x1x1024xf32, #tpu.memory_space<vmem>>, vector<1x1x1x512xf32>
    %58 = vector.shape_cast %57 : vector<1x1x1x512xf32> to vector<1x512xf32>
    %cst_22 = arith.constant 0.000000e+00 : f32
    %cst_23 = arith.constant 1.000000e+00 : f32
    %59 = vector.broadcast %cst_22 : f32 to vector<1x512xf32>
    %60 = arith.maximumf %59, %58 : vector<1x512xf32>
    %61 = vector.broadcast %cst_23 : f32 to vector<1x512xf32>
    %62 = arith.minimumf %61, %60 : vector<1x512xf32>
    %c0_24 = arith.constant 0 : index
    %c0_25 = arith.constant 0 : index
    %c0_26 = arith.constant 0 : index
    %63 = arith.index_cast %55 : i32 to index
    %64 = vector.load %arg3[%c0_24, %c0_25, %c0_26, %63] : memref<1x1x1x1024xf32, #tpu.memory_space<vmem>>, vector<1x1x1x512xf32>
    %65 = vector.shape_cast %64 : vector<1x1x1x512xf32> to vector<1x512xf32>
    %cst_27 = arith.constant 0.000000e+00 : f32
    %cst_28 = arith.constant 1.000000e+00 : f32
    %66 = vector.broadcast %cst_27 : f32 to vector<1x512xf32>
    %67 = arith.maximumf %66, %65 : vector<1x512xf32>
    %68 = vector.broadcast %cst_28 : f32 to vector<1x512xf32>
    %69 = arith.minimumf %68, %67 : vector<1x512xf32>
    %70 = vector.broadcast %62 : vector<1x512xf32> to vector<32x512xf32>
    %71 = vector.broadcast %8 : vector<32x1xf32> to vector<32x512xf32>
    %72 = arith.subf %70, %71 : vector<32x512xf32>
    %cst_29 = arith.constant -4.805000e+02 : f32
    %73 = vector.broadcast %cst_29 : f32 to vector<32x512xf32>
    %74 = arith.mulf %73, %72 : vector<32x512xf32>
    %75 = arith.mulf %74, %72 : vector<32x512xf32>
    %76 = math.exp %75 : vector<32x512xf32>
    %cst_30 = arith.constant dense<0.000000e+00> : vector<512xf32>
    %77 = vector.multi_reduction <add>, %76, %cst_30 [0] : vector<32x512xf32> to vector<512xf32>
    %78 = vector.shape_cast %77 : vector<512xf32> to vector<1x512xf32>
    %79 = tpu.reciprocal %78 {approx = true} : vector<1x512xf32> -> vector<1x512xf32>
    %80 = vector.broadcast %79 : vector<1x512xf32> to vector<32x512xf32>
    %81 = arith.mulf %76, %80 : vector<32x512xf32>
    %82 = vector.broadcast %69 : vector<1x512xf32> to vector<32x512xf32>
    %83 = vector.broadcast %8 : vector<32x1xf32> to vector<32x512xf32>
    %84 = arith.subf %82, %83 : vector<32x512xf32>
    %cst_31 = arith.constant -4.805000e+02 : f32
    %85 = vector.broadcast %cst_31 : f32 to vector<32x512xf32>
    %86 = arith.mulf %85, %84 : vector<32x512xf32>
    %87 = arith.mulf %86, %84 : vector<32x512xf32>
    %88 = math.exp %87 : vector<32x512xf32>
    %cst_32 = arith.constant dense<0.000000e+00> : vector<512xf32>
    %89 = vector.multi_reduction <add>, %88, %cst_32 [0] : vector<32x512xf32> to vector<512xf32>
    %90 = vector.shape_cast %89 : vector<512xf32> to vector<1x512xf32>
    %91 = tpu.reciprocal %90 {approx = true} : vector<1x512xf32> -> vector<1x512xf32>
    %92 = vector.broadcast %91 : vector<1x512xf32> to vector<32x512xf32>
    %93 = arith.mulf %88, %92 : vector<32x512xf32>
    %94 = arith.truncf %81 : vector<32x512xf32> to vector<32x512xbf16>
    %95 = arith.truncf %93 : vector<32x512xf32> to vector<32x512xbf16>
    %cst_33 = arith.constant dense<0.000000e+00> : vector<32x32xf32>
    %96 = tpu.matmul %94, %95, %cst_33 {dimension_numbers = #tpu.dot_dimension_numbers<[1], [1], [0], [0], [0, 0, 1, 0], [], []>} : vector<32x512xbf16>, vector<32x512xbf16>, vector<32x32xf32> -> vector<32x32xf32>
    %97 = arith.addf %53, %96 : vector<32x32xf32>
    %c2_i32 = arith.constant 2 : i32
    %c0_34 = arith.constant 0 : index
    %c0_35 = arith.constant 0 : index
    %98 = vector.load %arg5[%c0_34, %c0_35] : memref<32x32xf32, #tpu.memory_space<vmem>>, vector<32x32xf32>
    %99 = arith.addf %98, %97 : vector<32x32xf32>
    %c0_36 = arith.constant 0 : index
    %c0_37 = arith.constant 0 : index
    %100 = vector.load %arg5[%c0_36, %c0_37] : memref<32x32xf32, #tpu.memory_space<vmem>>, vector<32x32xf32>
    tpu.vector_store %arg5[%c0_36, %c0_37], %99 {strides = array<i32>} : memref<32x32xf32, #tpu.memory_space<vmem>>, vector<32x32xf32>,
    %c0_i32_38 = arith.constant 0 : i32
    %101 = arith.cmpi eq, %arg1, %c0_i32_38 : i32
    %102 = arith.extui %101 : i1 to i32
    %c0_i32_39 = arith.constant 0 : i32
    %103 = arith.cmpi ne, %102, %c0_i32_39 : i32
    scf.if %103 {
      %c0_40 = arith.constant 0 : index
      %c0_41 = arith.constant 0 : index
      %104 = vector.load %arg5[%c0_40, %c0_41] : memref<32x32xf32, #tpu.memory_space<vmem>>, vector<32x32xf32>
      %cst_42 = arith.constant 9.765625E-4 : f32
      %105 = vector.broadcast %cst_42 : f32 to vector<32x32xf32>
      %106 = arith.mulf %104, %105 : vector<32x32xf32>
      %cst_43 = arith.constant dense<0.000000e+00> : vector<32xf32>
      %107 = vector.multi_reduction <add>, %106, %cst_43 [1] : vector<32x32xf32> to vector<32xf32>
      %108 = vector.shape_cast %107 : vector<32xf32> to vector<32x1xf32>
      %cst_44 = arith.constant dense<0.000000e+00> : vector<32xf32>
      %109 = vector.multi_reduction <add>, %106, %cst_44 [0] : vector<32x32xf32> to vector<32xf32>
      %110 = vector.shape_cast %109 : vector<32xf32> to vector<1x32xf32>
      %111 = vector.broadcast %108 : vector<32x1xf32> to vector<32x32xf32>
      %112 = vector.broadcast %110 : vector<1x32xf32> to vector<32x32xf32>
      %113 = arith.mulf %111, %112 : vector<32x32xf32>
      %cst_45 = arith.constant 9.99999997E-7 : f32
      %114 = vector.broadcast %cst_45 : f32 to vector<32x32xf32>
      %115 = arith.addf %113, %114 : vector<32x32xf32>
      %116 = arith.divf %106, %115 : vector<32x32xf32>
      %cst_46 = arith.constant 9.99999997E-7 : f32
      %117 = vector.broadcast %cst_46 : f32 to vector<32x32xf32>
      %118 = arith.addf %116, %117 : vector<32x32xf32>
      %119 = math.log %118 : vector<32x32xf32>
      %120 = arith.mulf %106, %119 : vector<32x32xf32>
      %cst_47 = arith.constant dense<0.000000e+00> : vector<32xf32>
      %121 = vector.multi_reduction <add>, %120, %cst_47 [0] : vector<32x32xf32> to vector<32xf32>
      %122 = vector.shape_cast %121 : vector<32xf32> to vector<1x32xf32>
      %c0_48 = arith.constant 0 : index
      %c0_49 = arith.constant 0 : index
      %c0_50 = arith.constant 0 : index
      %123 = vector.load %arg4[%c0_48, %c0_49, %c0_50] : memref<1x1x32xf32, #tpu.memory_space<vmem>>, vector<1x1x32xf32>
      %124 = vector.shape_cast %123 : vector<1x1x32xf32> to vector<1x32xf32>
      %125 = vector.shape_cast %122 : vector<1x32xf32> to vector<1x1x32xf32>
      tpu.vector_store %arg4[%c0_48, %c0_49, %c0_50], %125 {strides = array<i32>} : memref<1x1x32xf32, #tpu.memory_space<vmem>>, vector<1x1x32xf32>,
    } else {
    }
    return
  }
  func.func @transform_0(%arg0: i32, %arg1: i32) -> (i32, i32, i32, i32) {
    %c0_i32 = arith.constant 0 : i32
    %c0_i32_0 = arith.constant 0 : i32
    %c0_i32_1 = arith.constant 0 : i32
    return %arg0, %arg1, %c0_i32, %c0_i32_0 : i32, i32, i32, i32
  }
  func.func @transform_1(%arg0: i32, %arg1: i32) -> (i32, i32, i32, i32) {
    %c0_i32 = arith.constant 0 : i32
    %c0_i32_0 = arith.constant 0 : i32
    %c0_i32_1 = arith.constant 0 : i32
    return %arg0, %arg1, %c0_i32, %c0_i32_0 : i32, i32, i32, i32
  }
  func.func @transform_2(%arg0: i32, %arg1: i32) -> (i32, i32, i32) {
    %c0_i32 = arith.constant 0 : i32
    %c0_i32_0 = arith.constant 0 : i32
    %c0_i32_1 = arith.constant 0 : i32
    return %arg0, %c0_i32, %c0_i32_0 : i32, i32, i32
  }
}

</mosaic_0001>

<llo_original>
// kernel: tpu_custom_call.1
$region0: #{tpu_custom_call.1}
  #allocation0 [shape = 'u32[]', space=smem, size = 0x4, offset = 0x4, fixed_abs, tag = 'smem constant byte address 0x4 - core index']
  #allocation1 [shape = 'u32[144,128]{1,0:T(1,128)}', space=vmem, size = 0x12000, scoped, tag = 'internal scratch']
  #allocation2 [shape = 'f32[32,32]{1,0:T(8,128)}', space=vmem, size = 0x4000, scoped, tag = 'scratch operand']
  %s0 = inlined_call_operand.hbm [shape: f32[2,1,1,1024], index: 0, kind: input, shape index: {}]
  %s1 = inlined_call_operand.hbm [shape: f32[2,1,1,1024], index: 1, kind: input, shape index: {}]
  %s2 = inlined_call_operand.hbm [shape: f32[2,1,32], index: 2, kind: output, shape index: {}]
  %s3 = sld [smem:[#allocation0]]
  $region57: #{tpu_custom_call.1} parent=0
    _
  %s5 = ssub.s32 1, %s3
  %s6 = scalar_select 0, %s5, %s3
  $region1: #{tpu_custom_call.1} parent=0
    #allocation3 [shape = 'u8[8192]{0}', space=vmem, size = 0x2000, scoped, tag = 'input window, operand 0']
    #allocation4 [shape = 's32[2]{0}', space=sflag, size = 0x8, scoped, tag = 'scoped memory for tpu_custom_call.1']
    #allocation5 [shape = 's32[2]{0}', space=sflag, size = 0x8, scoped, tag = 'scoped memory for tpu_custom_call.1']
    #allocation6 [shape = 'u8[8192]{0}', space=vmem, size = 0x2000, scoped, tag = 'input window, operand 1']
    #allocation7 [shape = 's32[2]{0}', space=sflag, size = 0x8, scoped, tag = 'scoped memory for tpu_custom_call.1']
    #allocation8 [shape = 'u8[1024]{0}', space=vmem, size = 0x400, scoped, tag = 'output window, operand 0']
    %7 = vsyncpa [#allocation4], 0
    %s8 = scalar_lea.sflag [#allocation4], 1
    %9 = vsyncpa %s8, 0
    %10 = vsyncpa [#allocation7], 0
    %s11 = scalar_lea.sflag [#allocation7], 1
    %12 = vsyncpa %s11, 0
    %13 = vsyncpa [#allocation5], 0
    %s14 = scalar_lea.sflag [#allocation5], 1
    %15 = vsyncpa %s14, 0
    loop: start=0, step=1, limit=4
    $region2: #{tpu_custom_call.1} parent=1 // loop_pre_header
      _
    $region3: #{tpu_custom_call.1} parent=1 // loop_header
      %s17 = sphi 0, %s21
      %p18 = scmp.ge.s32.totalorder %s17, 4
      %s24 = sphi 0, %s36
      %s25 = sphi 0, %s32
      %s26 = sphi 0, %s24
      %s27 = sphi 0, %s25
      %s28 = sphi 0, %s26
      %s29 = sphi 0, %s27
      %s41 = sphi 0, %s43
      %s44 = sphi 0, %s41
      %s45 = sphi 0, %s44
      %s61 = sphi 0, %s45
      %s69 = sphi 0, %s71
      %s72 = sphi 0, %s69
      %s73 = sphi 0, %s72
      %s89 = sphi 0, %s73
      %s95 = sphi 0, %s97
      %s98 = sphi 0, %s95
      %s99 = sphi 0, %s98
      %s115 = sphi 0, %s99
    $region4: #{tpu_custom_call.1} parent=1 // loop_header_branch
      %20 = sbr.rel (%p18) target = $region8
    $region5: #{tpu_custom_call.1} parent=1 // loop_body
      %s22 = ssub.s32 %s17, 1
      %s23 = ssub.s32 %s17, 2
      %s30 = sadd.s32 1, %s25
      %p31 = scmp.ge.s32.totalorder %s30, 1
      %s32 = scalar_select %p31, 0, %s30
      %s33 = sadd.s32 1, %s24
      %s34 = scalar_select %p31, %s33, %s24
      %p35 = scmp.ge.s32.totalorder %s34, 2
      %s36 = scalar_select %p35, 0, %s34
      %s37 = ssub.s32 %s24, %s36
      %s38 = ssub.s32 %s25, %s32
      %s39 = sor.u32 %s37, %s38
      %p40 = scmp.eq.s32.totalorder %s39, 0
      %s42 = sadd.s32 %s41, 1
      %s43 = scalar_select %p40, %s41, %s42
      %p46 = pneg %p40
      %p47 = scmp.eq.s32.totalorder %s17, 1
      %p48 = por %p46, %p47
      %p49 = scmp.ne.s32.totalorder %s41, %s44
      %p50 = scmp.eq.s32.totalorder %s17, 0
      %p51 = por %p49, %p50
      %p52 = scmp.ne.s32.totalorder %s41, %s44
      %p53 = scmp.eq.s32.totalorder %s22, 1
      %p54 = por %p52, %p53
      %p55 = scmp.ne.s32.totalorder %s44, %s45
      %p56 = scmp.eq.s32.totalorder %s22, 0
      %p57 = por %p55, %p56
      %p58 = scmp.ne.s32.totalorder %s44, %s45
      %p59 = scmp.eq.s32.totalorder %s23, 1
      %p60 = por %p58, %p59
      %p62 = scmp.ne.s32.totalorder %s45, %s61
      %p63 = scmp.eq.s32.totalorder %s23, 0
      %p64 = por %p62, %p63
      %s65 = ssub.s32 %s24, %s36
      %s66 = ssub.s32 %s25, %s32
      %s67 = sor.u32 %s65, %s66
      %p68 = scmp.eq.s32.totalorder %s67, 0
      %s70 = sadd.s32 %s69, 1
      %s71 = scalar_select %p68, %s69, %s70
      %p74 = pneg %p68
      %p75 = scmp.eq.s32.totalorder %s17, 1
      %p76 = por %p74, %p75
      %p77 = scmp.ne.s32.totalorder %s69, %s72
      %p78 = scmp.eq.s32.totalorder %s17, 0
      %p79 = por %p77, %p78
      %p80 = scmp.ne.s32.totalorder %s69, %s72
      %p81 = scmp.eq.s32.totalorder %s22, 1
      %p82 = por %p80, %p81
      %p83 = scmp.ne.s32.totalorder %s72, %s73
      %p84 = scmp.eq.s32.totalorder %s22, 0
      %p85 = por %p83, %p84
      %p86 = scmp.ne.s32.totalorder %s72, %s73
      %p87 = scmp.eq.s32.totalorder %s23, 1
      %p88 = por %p86, %p87
      %p90 = scmp.ne.s32.totalorder %s73, %s89
      %p91 = scmp.eq.s32.totalorder %s23, 0
      %p92 = por %p90, %p91
      %s93 = ssub.s32 %s24, %s36
      %p94 = scmp.eq.s32.totalorder %s93, 0
      %s96 = sadd.s32 %s95, 1
      %s97 = scalar_select %p94, %s95, %s96
      %p100 = pneg %p94
      %p101 = scmp.eq.s32.totalorder %s17, 1
      %p102 = por %p100, %p101
      %p103 = scmp.ne.s32.totalorder %s95, %s98
      %p104 = scmp.eq.s32.totalorder %s17, 0
      %p105 = por %p103, %p104
      %p106 = scmp.ne.s32.totalorder %s95, %s98
      %p107 = scmp.eq.s32.totalorder %s22, 1
      %p108 = por %p106, %p107
      %p109 = scmp.ne.s32.totalorder %s98, %s99
      %p110 = scmp.eq.s32.totalorder %s22, 0
      %p111 = por %p109, %p110
      %p112 = scmp.ne.s32.totalorder %s98, %s99
      %p113 = scmp.eq.s32.totalorder %s23, 1
      %p114 = por %p112, %p113
      %p116 = scmp.ne.s32.totalorder %s99, %s115
      %p117 = scmp.eq.s32.totalorder %s23, 0
      %p118 = por %p116, %p117
      %p119 = scmp.le.s32.totalorder 1, %s17
      %p120 = scmp.lt.s32.totalorder %s17, 3
      %p121 = pnand %p119, %p120
      %p122 = pneg %p121
      // Predicated region
      $region9: #{tpu_custom_call.1} parent=5 // pred_check
        _
      $region10: #{tpu_custom_call.1} parent=5 // pred_check_branch
        %124 = sbr.rel (%p121) target = $region12
      $region11: #{tpu_custom_call.1} parent=5 // pred_region
        %s125 = ssub.s32 %s17, 1
      $region12: #{tpu_custom_call.1} parent=5 // pred_fallthru
        _
      %p126 = scmp.lt.s32.totalorder %s17, 2
      // Predicated region
      $region13: #{tpu_custom_call.1} parent=5 // pred_check
        %p127 = pneg %p126
      $region14: #{tpu_custom_call.1} parent=5 // pred_check_branch
        %129 = sbr.rel (%p127) target = $region16
      $region15: #{tpu_custom_call.1} parent=5 // pred_region
        // Predicated region
        $region17: #{tpu_custom_call.1} parent=15 // pred_check
          %p130 = pneg %p51
        $region18: #{tpu_custom_call.1} parent=15 // pred_check_branch
          %132 = sbr.rel (%p130) target = $region20
        $region19: #{tpu_custom_call.1} parent=15 // pred_region
          %s133 = sand.u32 %s41, 1
          %s134 = scalar_lea.sflag [#allocation4], %s133
          %s135 = sand.u32 %s41, 1
          %s136 = smul.addr %s135, 8
          %s137 = scalar_lea.vmem [#allocation3], %s136
          %s139 = ssub.s32 128, 128
          %140 = vsyncadd %s134, %s139
          %s141 = smul.addr %s25, 8
          %s142 = smul.addr %s24, 8
          %s143 = sadd.s32 %s141, %s142
          %s144 = smul.addr %s143, 16
          %s145 = scalar_lea.hbm %s0, %s144
          %s147 = sshll.u32 %s137, 4
          %s148 = int_to_ptr.vmem [resolvable:$true] %s147
          %150 = dma.hbm_to_vmem [thread:$0]  %s145, 128, %s148, %s134
        $region20: #{tpu_custom_call.1} parent=15 // pred_fallthru
          _
        // Predicated region
        $region21: #{tpu_custom_call.1} parent=15 // pred_check
          %p151 = pneg %p79
        $region22: #{tpu_custom_call.1} parent=15 // pred_check_branch
          %153 = sbr.rel (%p151) target = $region24
        $region23: #{tpu_custom_call.1} parent=15 // pred_region
          %s154 = sand.u32 %s69, 1
          %s155 = scalar_lea.sflag [#allocation7], %s154
          %s156 = sand.u32 %s69, 1
          %s157 = smul.addr %s156, 8
          %s158 = scalar_lea.vmem [#allocation6], %s157
          %s160 = ssub.s32 128, 128
          %161 = vsyncadd %s155, %s160
          %s162 = smul.addr %s25, 8
          %s163 = smul.addr %s24, 8
          %s164 = sadd.s32 %s162, %s163
          %s165 = smul.addr %s164, 16
          %s166 = scalar_lea.hbm %s1, %s165
          %s168 = sshll.u32 %s158, 4
          %s169 = int_to_ptr.vmem [resolvable:$true] %s168
          %171 = dma.hbm_to_vmem [thread:$0]  %s166, 128, %s169, %s155
        $region24: #{tpu_custom_call.1} parent=15 // pred_fallthru
          _
      $region16: #{tpu_custom_call.1} parent=5 // pred_fallthru
        _
      %p172 = scmp.le.s32.totalorder 1, %s17
      %p173 = scmp.lt.s32.totalorder %s17, 3
      %p174 = pnand %p172, %p173
      %p175 = pneg %p174
      // Predicated region
      $region25: #{tpu_custom_call.1} parent=5 // pred_check
        _
      $region26: #{tpu_custom_call.1} parent=5 // pred_check_branch
        %177 = sbr.rel (%p174) target = $region28
      $region27: #{tpu_custom_call.1} parent=5 // pred_region
        %s178 = ssub.s32 %s17, 1
        %s179 = sand.u32 %s44, 1
        %s180 = scalar_lea.sflag [#allocation4], %s179
        %s181 = sand.u32 %s44, 1
        %s182 = smul.addr %s181, 8
        %s183 = scalar_lea.vmem [#allocation3], %s182
        // Predicated region
        $region29: #{tpu_custom_call.1} parent=27 // pred_check
          %p184 = pneg %p57
        $region30: #{tpu_custom_call.1} parent=27 // pred_check_branch
          %186 = sbr.rel (%p184) target = $region32
        $region31: #{tpu_custom_call.1} parent=27 // pred_region
          %187 = dma.done %s180, 128
        $region32: #{tpu_custom_call.1} parent=27 // pred_fallthru
          _
        %s188 = sand.u32 %s72, 1
        %s189 = scalar_lea.sflag [#allocation7], %s188
        %s190 = sand.u32 %s72, 1
        %s191 = smul.addr %s190, 8
        %s192 = scalar_lea.vmem [#allocation6], %s191
        // Predicated region
        $region33: #{tpu_custom_call.1} parent=27 // pred_check
          %p193 = pneg %p85
        $region34: #{tpu_custom_call.1} parent=27 // pred_check_branch
          %195 = sbr.rel (%p193) target = $region36
        $region35: #{tpu_custom_call.1} parent=27 // pred_region
          %196 = dma.done %s189, 128
        $region36: #{tpu_custom_call.1} parent=27 // pred_fallthru
          _
        %s197 = sand.u32 %s44, 1
        %s198 = scalar_lea.sflag [#allocation4], %s197
        %s199 = sand.u32 %s44, 1
        %s200 = smul.addr %s199, 8
        %s201 = scalar_lea.vmem [#allocation3], %s200
        %p202 = pneg %p57
        %p203 = pneg %p54
        %s204 = sand.u32 %s72, 1
        %s205 = scalar_lea.sflag [#allocation7], %s204
        %s206 = sand.u32 %s72, 1
        %s207 = smul.addr %s206, 8
        %s208 = scalar_lea.vmem [#allocation6], %s207
        %p209 = pneg %p85
        %p210 = pneg %p82
        %p211 = pneg %p111
        %p212 = pneg %p108
        %s213 = sand.u32 %s98, 1
        %s214 = scalar_lea.sflag [#allocation5], %s213
        %s215 = sand.u32 %s98, 1
        %s216 = scalar_lea.vmem [#allocation8], %s215
        %p218 = scmp.eq.s32.totalorder %s27, 0
        // Predicated region
        $region37: #{tpu_custom_call.1} parent=27 // pred_check
          %p219 = pneg %p218
        $region38: #{tpu_custom_call.1} parent=27 // pred_check_branch
          %221 = sbr.rel (%p219) target = $region40
        $region39: #{tpu_custom_call.1} parent=27 // pred_region
          %vm222 = vcmask 261120
          %223 = vst.msk [vmem:[#allocation2] sm:$0xff] %vm222, 0.0
          %224 = vst.msk [vmem:[#allocation2 + $0x8] sm:$0xff] %vm222, 0.0
          %225 = vst.msk [vmem:[#allocation2 + $0x10] sm:$0xff] %vm222, 0.0
          %226 = vst.msk [vmem:[#allocation2 + $0x18] sm:$0xff] %vm222, 0.0
        $region40: #{tpu_custom_call.1} parent=27 // pred_fallthru
          _
        %v227 = vlaneseq
        %v228 = vshrl.u32 %v227, 7
        %v229 = vadd.s32 %v228, 8
        %v230 = vadd.s32 %v228, 16
        %v231 = vadd.s32 %v228, 24
        %v232 = vcvt.s32.f32 %v228
        %v233 = vcvt.s32.f32 %v229
        %v234 = vcvt.s32.f32 %v230
        %v235 = vcvt.s32.f32 %v231
        %v236 = vmul.f32 %v232, 0.032258064
        %v237 = vmul.f32 %v233, 0.032258064
        %v238 = vmul.f32 %v234, 0.032258064
        %v239 = vmul.f32 %v235, 0.032258064
        %v240 = vadd.f32 %v236, 0.0
        %v241 = vadd.f32 %v237, 0.0
        %v242 = vadd.f32 %v238, 0.0
        %v243 = vadd.f32 %v239, 0.0
        %v244 = vld [vmem:[%s183] sm:$0xf]
        %v245 = vmax.f32 %v244, 0.0
        %v246 = vmin.f32 %v245, 1.0
        %v247 = vld [vmem:[%s192] sm:$0xf]
        %v248 = vmax.f32 %v247, 0.0
        %v249 = vmin.f32 %v248, 1.0
        %v251 = vlaneseq
        %v252 = vshrl.u32 %v251, 7
        %v253 = vsub.s32 0, %v252
        %v254 = vrot.slane %v246, %v253
        %v255 = vlaneseq
        %v256 = vshrl.u32 %v255, 7
        %v257 = vsub.s32 1, %v256
        %v258 = vrot.slane %v246, %v257
        %v259 = vlaneseq
        %v260 = vshrl.u32 %v259, 7
        %v261 = vsub.s32 2, %v260
        %v262 = vrot.slane %v246, %v261
        %v263 = vlaneseq
        %v264 = vshrl.u32 %v263, 7
        %v265 = vsub.s32 3, %v264
        %v266 = vrot.slane %v246, %v265
        %v271 = vsub.f32 %v254, %v240
        %v272 = vsub.f32 %v258, %v240
        %v273 = vsub.f32 %v262, %v240
        %v274 = vsub.f32 %v266, %v240
        %v275 = vsub.f32 %v254, %v241
        %v276 = vsub.f32 %v258, %v241
        %v277 = vsub.f32 %v262, %v241
        %v278 = vsub.f32 %v266, %v241
        %v279 = vsub.f32 %v254, %v242
        %v280 = vsub.f32 %v258, %v242
        %v281 = vsub.f32 %v262, %v242
        %v282 = vsub.f32 %v266, %v242
        %v283 = vsub.f32 %v254, %v243
        %v284 = vsub.f32 %v258, %v243
        %v285 = vsub.f32 %v262, %v243
        %v286 = vsub.f32 %v266, %v243
        %v287 = vmul.f32 %v271, -480.5
        %v288 = vmul.f32 %v272, -480.5
        %v289 = vmul.f32 %v273, -480.5
        %v290 = vmul.f32 %v274, -480.5
        %v291 = vmul.f32 %v275, -480.5
        %v292 = vmul.f32 %v276, -480.5
        %v293 = vmul.f32 %v277, -480.5
        %v294 = vmul.f32 %v278, -480.5
        %v295 = vmul.f32 %v279, -480.5
        %v296 = vmul.f32 %v280, -480.5
        %v297 = vmul.f32 %v281, -480.5
        %v298 = vmul.f32 %v282, -480.5
        %v299 = vmul.f32 %v283, -480.5
        %v300 = vmul.f32 %v284, -480.5
        %v301 = vmul.f32 %v285, -480.5
        %v302 = vmul.f32 %v286, -480.5
        %v303 = vmul.f32 %v287, %v271
        %v304 = vmul.f32 %v288, %v272
        %v305 = vmul.f32 %v289, %v273
        %v306 = vmul.f32 %v290, %v274
        %v307 = vmul.f32 %v291, %v275
        %v308 = vmul.f32 %v292, %v276
        %v309 = vmul.f32 %v293, %v277
        %v310 = vmul.f32 %v294, %v278
        %v311 = vmul.f32 %v295, %v279
        %v312 = vmul.f32 %v296, %v280
        %v313 = vmul.f32 %v297, %v281
        %v314 = vmul.f32 %v298, %v282
        %v315 = vmul.f32 %v299, %v283
        %v316 = vmul.f32 %v300, %v284
        %v317 = vmul.f32 %v301, %v285
        %v318 = vmul.f32 %v302, %v286
        %v319 = vmul.f32 %v303, 1.442695
        %v320 = vpow.pop %v319
        %v321 = vmul.f32 %v304, 1.442695
        %v322 = vpow.pop %v321
        %v323 = vmul.f32 %v305, 1.442695
        %v324 = vpow.pop %v323
        %v325 = vmul.f32 %v306, 1.442695
        %v326 = vpow.pop %v325
        %v327 = vmul.f32 %v307, 1.442695
        %v328 = vpow.pop %v327
        %v329 = vmul.f32 %v308, 1.442695
        %v330 = vpow.pop %v329
        %v331 = vmul.f32 %v309, 1.442695
        %v332 = vpow.pop %v331
        %v333 = vmul.f32 %v310, 1.442695
        %v334 = vpow.pop %v333
        %v335 = vmul.f32 %v311, 1.442695
        %v336 = vpow.pop %v335
        %v337 = vmul.f32 %v312, 1.442695
        %v338 = vpow.pop %v337
        %v339 = vmul.f32 %v313, 1.442695
        %v340 = vpow.pop %v339
        %v341 = vmul.f32 %v314, 1.442695
        %v342 = vpow.pop %v341
        %v343 = vmul.f32 %v315, 1.442695
        %v344 = vpow.pop %v343
        %v345 = vmul.f32 %v316, 1.442695
        %v346 = vpow.pop %v345
        %v347 = vmul.f32 %v317, 1.442695
        %v348 = vpow.pop %v347
        %v349 = vmul.f32 %v318, 1.442695
        %v350 = vpow.pop %v349
        %v351 = vadd.f32 %v320, %v328
        %v352 = vadd.f32 %v351, %v336
        %v353 = vadd.f32 %v352, %v344
        %v354 = vrot.slane %v353, 4
        %v355 = vadd.f32 %v353, %v354
        %v356 = vrot.slane %v355, 2
        %v357 = vadd.f32 %v355, %v356
        %v358 = vrot.slane %v357, 1
        %v359 = vadd.f32 %v357, %v358
        %v360 = vadd.f32 %v322, %v330
        %v361 = vadd.f32 %v360, %v338
        %v362 = vadd.f32 %v361, %v346
        %v363 = vrot.slane %v362, 4
        %v364 = vadd.f32 %v362, %v363
        %v365 = vrot.slane %v364, 2
        %v366 = vadd.f32 %v364, %v365
        %v367 = vrot.slane %v366, 1
        %v368 = vadd.f32 %v366, %v367
        %v369 = vadd.f32 %v324, %v332
        %v370 = vadd.f32 %v369, %v340
        %v371 = vadd.f32 %v370, %v348
        %v372 = vrot.slane %v371, 4
        %v373 = vadd.f32 %v371, %v372
        %v374 = vrot.slane %v373, 2
        %v375 = vadd.f32 %v373, %v374
        %v376 = vrot.slane %v375, 1
        %v377 = vadd.f32 %v375, %v376
        %v378 = vadd.f32 %v326, %v334
        %v379 = vadd.f32 %v378, %v342
        %v380 = vadd.f32 %v379, %v350
        %v381 = vrot.slane %v380, 4
        %v382 = vadd.f32 %v380, %v381
        %v383 = vrot.slane %v382, 2
        %v384 = vadd.f32 %v382, %v383
        %v385 = vrot.slane %v384, 1
        %v386 = vadd.f32 %v384, %v385
        %v387 = vrcp.pop %v359
        %v388 = vrcp.pop %v368
        %v389 = vrcp.pop %v377
        %v390 = vrcp.pop %v386
        %v391 = vmul.f32 %v320, %v387
        %v392 = vmul.f32 %v322, %v388
        %v393 = vmul.f32 %v324, %v389
        %v394 = vmul.f32 %v326, %v390
        %v395 = vmul.f32 %v328, %v387
        %v396 = vmul.f32 %v330, %v388
        %v397 = vmul.f32 %v332, %v389
        %v398 = vmul.f32 %v334, %v390
        %v399 = vmul.f32 %v336, %v387
        %v400 = vmul.f32 %v338, %v388
        %v401 = vmul.f32 %v340, %v389
        %v402 = vmul.f32 %v342, %v390
        %v403 = vmul.f32 %v344, %v387
        %v404 = vmul.f32 %v346, %v388
        %v405 = vmul.f32 %v348, %v389
        %v406 = vmul.f32 %v350, %v390
        %v408 = vlaneseq
        %v409 = vshrl.u32 %v408, 7
        %v410 = vsub.s32 0, %v409
        %v411 = vrot.slane %v249, %v410
        %v412 = vlaneseq
        %v413 = vshrl.u32 %v412, 7
        %v414 = vsub.s32 1, %v413
        %v415 = vrot.slane %v249, %v414
        %v416 = vlaneseq
        %v417 = vshrl.u32 %v416, 7
        %v418 = vsub.s32 2, %v417
        %v419 = vrot.slane %v249, %v418
        %v420 = vlaneseq
        %v421 = vshrl.u32 %v420, 7
        %v422 = vsub.s32 3, %v421
        %v423 = vrot.slane %v249, %v422
        %v428 = vsub.f32 %v411, %v240
        %v429 = vsub.f32 %v415, %v240
        %v430 = vsub.f32 %v419, %v240
        %v431 = vsub.f32 %v423, %v240
        %v432 = vsub.f32 %v411, %v241
        %v433 = vsub.f32 %v415, %v241
        %v434 = vsub.f32 %v419, %v241
        %v435 = vsub.f32 %v423, %v241
        %v436 = vsub.f32 %v411, %v242
        %v437 = vsub.f32 %v415, %v242
        %v438 = vsub.f32 %v419, %v242
        %v439 = vsub.f32 %v423, %v242
        %v440 = vsub.f32 %v411, %v243
        %v441 = vsub.f32 %v415, %v243
        %v442 = vsub.f32 %v419, %v243
        %v443 = vsub.f32 %v423, %v243
        %v444 = vmul.f32 %v428, -480.5
        %v445 = vmul.f32 %v429, -480.5
        %v446 = vmul.f32 %v430, -480.5
        %v447 = vmul.f32 %v431, -480.5
        %v448 = vmul.f32 %v432, -480.5
        %v449 = vmul.f32 %v433, -480.5
        %v450 = vmul.f32 %v434, -480.5
        %v451 = vmul.f32 %v435, -480.5
        %v452 = vmul.f32 %v436, -480.5
        %v453 = vmul.f32 %v437, -480.5
        %v454 = vmul.f32 %v438, -480.5
        %v455 = vmul.f32 %v439, -480.5
        %v456 = vmul.f32 %v440, -480.5
        %v457 = vmul.f32 %v441, -480.5
        %v458 = vmul.f32 %v442, -480.5
        %v459 = vmul.f32 %v443, -480.5
        %v460 = vmul.f32 %v444, %v428
        %v461 = vmul.f32 %v445, %v429
        %v462 = vmul.f32 %v446, %v430
        %v463 = vmul.f32 %v447, %v431
        %v464 = vmul.f32 %v448, %v432
        %v465 = vmul.f32 %v449, %v433
        %v466 = vmul.f32 %v450, %v434
        %v467 = vmul.f32 %v451, %v435
        %v468 = vmul.f32 %v452, %v436
        %v469 = vmul.f32 %v453, %v437
        %v470 = vmul.f32 %v454, %v438
        %v471 = vmul.f32 %v455, %v439
        %v472 = vmul.f32 %v456, %v440
        %v473 = vmul.f32 %v457, %v441
        %v474 = vmul.f32 %v458, %v442
        %v475 = vmul.f32 %v459, %v443
        %v476 = vmul.f32 %v460, 1.442695
        %v477 = vpow.pop %v476
        %v478 = vmul.f32 %v461, 1.442695
        %v479 = vpow.pop %v478
        %v480 = vmul.f32 %v462, 1.442695
        %v481 = vpow.pop %v480
        %v482 = vmul.f32 %v463, 1.442695
        %v483 = vpow.pop %v482
        %v484 = vmul.f32 %v464, 1.442695
        %v485 = vpow.pop %v484
        %v486 = vmul.f32 %v465, 1.442695
        %v487 = vpow.pop %v486
        %v488 = vmul.f32 %v466, 1.442695
        %v489 = vpow.pop %v488
        %v490 = vmul.f32 %v467, 1.442695
        %v491 = vpow.pop %v490
        %v492 = vmul.f32 %v468, 1.442695
        %v493 = vpow.pop %v492
        %v494 = vmul.f32 %v469, 1.442695
        %v495 = vpow.pop %v494
        %v496 = vmul.f32 %v470, 1.442695
        %v497 = vpow.pop %v496
        %v498 = vmul.f32 %v471, 1.442695
        %v499 = vpow.pop %v498
        %v500 = vmul.f32 %v472, 1.442695
        %v501 = vpow.pop %v500
        %v502 = vmul.f32 %v473, 1.442695
        %v503 = vpow.pop %v502
        %v504 = vmul.f32 %v474, 1.442695
        %v505 = vpow.pop %v504
        %v506 = vmul.f32 %v475, 1.442695
        %v507 = vpow.pop %v506
        %v508 = vadd.f32 %v477, %v485
        %v509 = vadd.f32 %v508, %v493
        %v510 = vadd.f32 %v509, %v501
        %v511 = vrot.slane %v510, 4
        %v512 = vadd.f32 %v510, %v511
        %v513 = vrot.slane %v512, 2
        %v514 = vadd.f32 %v512, %v513
        %v515 = vrot.slane %v514, 1
        %v516 = vadd.f32 %v514, %v515
        %v517 = vadd.f32 %v479, %v487
        %v518 = vadd.f32 %v517, %v495
        %v519 = vadd.f32 %v518, %v503
        %v520 = vrot.slane %v519, 4
        %v521 = vadd.f32 %v519, %v520
        %v522 = vrot.slane %v521, 2
        %v523 = vadd.f32 %v521, %v522
        %v524 = vrot.slane %v523, 1
        %v525 = vadd.f32 %v523, %v524
        %v526 = vadd.f32 %v481, %v489
        %v527 = vadd.f32 %v526, %v497
        %v528 = vadd.f32 %v527, %v505
        %v529 = vrot.slane %v528, 4
        %v530 = vadd.f32 %v528, %v529
        %v531 = vrot.slane %v530, 2
        %v532 = vadd.f32 %v530, %v531
        %v533 = vrot.slane %v532, 1
        %v534 = vadd.f32 %v532, %v533
        %v535 = vadd.f32 %v483, %v491
        %v536 = vadd.f32 %v535, %v499
        %v537 = vadd.f32 %v536, %v507
        %v538 = vrot.slane %v537, 4
        %v539 = vadd.f32 %v537, %v538
        %v540 = vrot.slane %v539, 2
        %v541 = vadd.f32 %v539, %v540
        %v542 = vrot.slane %v541, 1
        %v543 = vadd.f32 %v541, %v542
        %v544 = vrcp.pop %v516
        %v545 = vrcp.pop %v525
        %v546 = vrcp.pop %v534
        %v547 = vrcp.pop %v543
        %v548 = vmul.f32 %v477, %v544
        %v549 = vmul.f32 %v479, %v545
        %v550 = vmul.f32 %v481, %v546
        %v551 = vmul.f32 %v483, %v547
        %v552 = vmul.f32 %v485, %v544
        %v553 = vmul.f32 %v487, %v545
        %v554 = vmul.f32 %v489, %v546
        %v555 = vmul.f32 %v491, %v547
        %v556 = vmul.f32 %v493, %v544
        %v557 = vmul.f32 %v495, %v545
        %v558 = vmul.f32 %v497, %v546
        %v559 = vmul.f32 %v499, %v547
        %v560 = vmul.f32 %v501, %v544
        %v561 = vmul.f32 %v503, %v545
        %v562 = vmul.f32 %v505, %v546
        %v563 = vmul.f32 %v507, %v547
        %v564 = vpack.c.bf16 %v395, %v391
        %v565 = vpack.c.bf16 %v396, %v392
        %v566 = vpack.c.bf16 %v397, %v393
        %v567 = vpack.c.bf16 %v398, %v394
        %v568 = vpack.c.bf16 %v403, %v399
        %v569 = vpack.c.bf16 %v404, %v400
        %v570 = vpack.c.bf16 %v405, %v401
        %v571 = vpack.c.bf16 %v406, %v402
        %v572 = vpack.c.bf16 %v552, %v548
        %v573 = vpack.c.bf16 %v553, %v549
        %v574 = vpack.c.bf16 %v554, %v550
        %v575 = vpack.c.bf16 %v555, %v551
        %v576 = vpack.c.bf16 %v560, %v556
        %v577 = vpack.c.bf16 %v561, %v557
        %v578 = vpack.c.bf16 %v562, %v558
        %v579 = vpack.c.bf16 %v563, %v559
        %s580 = scalar_lea.vmem %s183, 4 [#allocation3]
        %v581 = vld [vmem:[%s580] sm:$0xf]
        %v582 = vmax.f32 %v581, 0.0
        %v583 = vmin.f32 %v582, 1.0
        %s584 = scalar_lea.vmem %s192, 4 [#allocation6]
        %v585 = vld [vmem:[%s584] sm:$0xf]
        %v586 = vmax.f32 %v585, 0.0
        %v587 = vmin.f32 %v586, 1.0
        %v589 = vlaneseq
        %v590 = vshrl.u32 %v589, 7
        %v591 = vsub.s32 0, %v590
        %v592 = vrot.slane %v583, %v591
        %v593 = vlaneseq
        %v594 = vshrl.u32 %v593, 7
        %v595 = vsub.s32 1, %v594
        %v596 = vrot.slane %v583, %v595
        %v597 = vlaneseq
        %v598 = vshrl.u32 %v597, 7
        %v599 = vsub.s32 2, %v598
        %v600 = vrot.slane %v583, %v599
        %v601 = vlaneseq
        %v602 = vshrl.u32 %v601, 7
        %v603 = vsub.s32 3, %v602
        %v604 = vrot.slane %v583, %v603
        %v609 = vsub.f32 %v592, %v240
        %v610 = vsub.f32 %v596, %v240
        %v611 = vsub.f32 %v600, %v240
        %v612 = vsub.f32 %v604, %v240
        %v613 = vsub.f32 %v592, %v241
        %v614 = vsub.f32 %v596, %v241
        %v615 = vsub.f32 %v600, %v241
        %v616 = vsub.f32 %v604, %v241
        %v617 = vsub.f32 %v592, %v242
        %v618 = vsub.f32 %v596, %v242
        %v619 = vsub.f32 %v600, %v242
        %v620 = vsub.f32 %v604, %v242
        %v621 = vsub.f32 %v592, %v243
        %v622 = vsub.f32 %v596, %v243
        %v623 = vsub.f32 %v600, %v243
        %v624 = vsub.f32 %v604, %v243
        %v625 = vmul.f32 %v609, -480.5
        %v626 = vmul.f32 %v610, -480.5
        %v627 = vmul.f32 %v611, -480.5
        %v628 = vmul.f32 %v612, -480.5
        %v629 = vmul.f32 %v613, -480.5
        %v630 = vmul.f32 %v614, -480.5
        %v631 = vmul.f32 %v615, -480.5
        %v632 = vmul.f32 %v616, -480.5
        %v633 = vmul.f32 %v617, -480.5
        %v634 = vmul.f32 %v618, -480.5
        %v635 = vmul.f32 %v619, -480.5
        %v636 = vmul.f32 %v620, -480.5
        %v637 = vmul.f32 %v621, -480.5
        %v638 = vmul.f32 %v622, -480.5
        %v639 = vmul.f32 %v623, -480.5
        %v640 = vmul.f32 %v624, -480.5
        %v641 = vmul.f32 %v625, %v609
        %v642 = vmul.f32 %v626, %v610
        %v643 = vmul.f32 %v627, %v611
        %v644 = vmul.f32 %v628, %v612
        %v645 = vmul.f32 %v629, %v613
        %v646 = vmul.f32 %v630, %v614
        %v647 = vmul.f32 %v631, %v615
        %v648 = vmul.f32 %v632, %v616
        %v649 = vmul.f32 %v633, %v617
        %v650 = vmul.f32 %v634, %v618
        %v651 = vmul.f32 %v635, %v619
        %v652 = vmul.f32 %v636, %v620
        %v653 = vmul.f32 %v637, %v621
        %v654 = vmul.f32 %v638, %v622
        %v655 = vmul.f32 %v639, %v623
        %v656 = vmul.f32 %v640, %v624
        %v657 = vmul.f32 %v641, 1.442695
        %v658 = vpow.pop %v657
        %v659 = vmul.f32 %v642, 1.442695
        %v660 = vpow.pop %v659
        %v661 = vmul.f32 %v643, 1.442695
        %v662 = vpow.pop %v661
        %v663 = vmul.f32 %v644, 1.442695
        %v664 = vpow.pop %v663
        %v665 = vmul.f32 %v645, 1.442695
        %v666 = vpow.pop %v665
        %v667 = vmul.f32 %v646, 1.442695
        %v668 = vpow.pop %v667
        %v669 = vmul.f32 %v647, 1.442695
        %v670 = vpow.pop %v669
        %v671 = vmul.f32 %v648, 1.442695
        %v672 = vpow.pop %v671
        %v673 = vmul.f32 %v649, 1.442695
        %v674 = vpow.pop %v673
        %v675 = vmul.f32 %v650, 1.442695
        %v676 = vpow.pop %v675
        %v677 = vmul.f32 %v651, 1.442695
        %v678 = vpow.pop %v677
        %v679 = vmul.f32 %v652, 1.442695
        %v680 = vpow.pop %v679
        %v681 = vmul.f32 %v653, 1.442695
        %v682 = vpow.pop %v681
        %v683 = vmul.f32 %v654, 1.442695
        %v684 = vpow.pop %v683
        %v685 = vmul.f32 %v655, 1.442695
        %v686 = vpow.pop %v685
        %v687 = vmul.f32 %v656, 1.442695
        %v688 = vpow.pop %v687
        %v689 = vadd.f32 %v658, %v666
        %v690 = vadd.f32 %v689, %v674
        %v691 = vadd.f32 %v690, %v682
        %v692 = vrot.slane %v691, 4
        %v693 = vadd.f32 %v691, %v692
        %v694 = vrot.slane %v693, 2
        %v695 = vadd.f32 %v693, %v694
        %v696 = vrot.slane %v695, 1
        %v697 = vadd.f32 %v695, %v696
        %v698 = vadd.f32 %v660, %v668
        %v699 = vadd.f32 %v698, %v676
        %v700 = vadd.f32 %v699, %v684
        %v701 = vrot.slane %v700, 4
        %v702 = vadd.f32 %v700, %v701
        %v703 = vrot.slane %v702, 2
        %v704 = vadd.f32 %v702, %v703
        %v705 = vrot.slane %v704, 1
        %v706 = vadd.f32 %v704, %v705
        %v707 = vadd.f32 %v662, %v670
        %v708 = vadd.f32 %v707, %v678
        %v709 = vadd.f32 %v708, %v686
        %v710 = vrot.slane %v709, 4
        %v711 = vadd.f32 %v709, %v710
        %v712 = vrot.slane %v711, 2
        %v713 = vadd.f32 %v711, %v712
        %v714 = vrot.slane %v713, 1
        %v715 = vadd.f32 %v713, %v714
        %v716 = vadd.f32 %v664, %v672
        %v717 = vadd.f32 %v716, %v680
        %v718 = vadd.f32 %v717, %v688
        %v719 = vrot.slane %v718, 4
        %v720 = vadd.f32 %v718, %v719
        %v721 = vrot.slane %v720, 2
        %v722 = vadd.f32 %v720, %v721
        %v723 = vrot.slane %v722, 1
        %v724 = vadd.f32 %v722, %v723
        %v725 = vrcp.pop %v697
        %v726 = vrcp.pop %v706
        %v727 = vrcp.pop %v715
        %v728 = vrcp.pop %v724
        %v729 = vmul.f32 %v658, %v725
        %v730 = vmul.f32 %v660, %v726
        %v731 = vmul.f32 %v662, %v727
        %v732 = vmul.f32 %v664, %v728
        %v733 = vmul.f32 %v666, %v725
        %v734 = vmul.f32 %v668, %v726
        %v735 = vmul.f32 %v670, %v727
        %v736 = vmul.f32 %v672, %v728
        %v737 = vmul.f32 %v674, %v725
        %v738 = vmul.f32 %v676, %v726
        %v739 = vmul.f32 %v678, %v727
        %v740 = vmul.f32 %v680, %v728
        %v741 = vmul.f32 %v682, %v725
        %v742 = vmul.f32 %v684, %v726
        %v743 = vmul.f32 %v686, %v727
        %v744 = vmul.f32 %v688, %v728
        %v746 = vlaneseq
        %v747 = vshrl.u32 %v746, 7
        %v748 = vsub.s32 0, %v747
        %v749 = vrot.slane %v587, %v748
        %v750 = vlaneseq
        %v751 = vshrl.u32 %v750, 7
        %v752 = vsub.s32 1, %v751
        %v753 = vrot.slane %v587, %v752
        %v754 = vlaneseq
        %v755 = vshrl.u32 %v754, 7
        %v756 = vsub.s32 2, %v755
        %v757 = vrot.slane %v587, %v756
        %v758 = vlaneseq
        %v759 = vshrl.u32 %v758, 7
        %v760 = vsub.s32 3, %v759
        %v761 = vrot.slane %v587, %v760
        %v766 = vsub.f32 %v749, %v240
        %v767 = vsub.f32 %v753, %v240
        %v768 = vsub.f32 %v757, %v240
        %v769 = vsub.f32 %v761, %v240
        %v770 = vsub.f32 %v749, %v241
        %v771 = vsub.f32 %v753, %v241
        %v772 = vsub.f32 %v757, %v241
        %v773 = vsub.f32 %v761, %v241
        %v774 = vsub.f32 %v749, %v242
        %v775 = vsub.f32 %v753, %v242
        %v776 = vsub.f32 %v757, %v242
        %v777 = vsub.f32 %v761, %v242
        %v778 = vsub.f32 %v749, %v243
        %v779 = vsub.f32 %v753, %v243
        %v780 = vsub.f32 %v757, %v243
        %v781 = vsub.f32 %v761, %v243
        %v782 = vmul.f32 %v766, -480.5
        %v783 = vmul.f32 %v767, -480.5
        %v784 = vmul.f32 %v768, -480.5
        %v785 = vmul.f32 %v769, -480.5
        %v786 = vmul.f32 %v770, -480.5
        %v787 = vmul.f32 %v771, -480.5
        %v788 = vmul.f32 %v772, -480.5
        %v789 = vmul.f32 %v773, -480.5
        %v790 = vmul.f32 %v774, -480.5
        %v791 = vmul.f32 %v775, -480.5
        %v792 = vmul.f32 %v776, -480.5
        %v793 = vmul.f32 %v777, -480.5
        %v794 = vmul.f32 %v778, -480.5
        %v795 = vmul.f32 %v779, -480.5
        %v796 = vmul.f32 %v780, -480.5
        %v797 = vmul.f32 %v781, -480.5
        %v798 = vmul.f32 %v782, %v766
        %v799 = vmul.f32 %v783, %v767
        %v800 = vmul.f32 %v784, %v768
        %v801 = vmul.f32 %v785, %v769
        %v802 = vmul.f32 %v786, %v770
        %v803 = vmul.f32 %v787, %v771
        %v804 = vmul.f32 %v788, %v772
        %v805 = vmul.f32 %v789, %v773
        %v806 = vmul.f32 %v790, %v774
        %v807 = vmul.f32 %v791, %v775
        %v808 = vmul.f32 %v792, %v776
        %v809 = vmul.f32 %v793, %v777
        %v810 = vmul.f32 %v794, %v778
        %v811 = vmul.f32 %v795, %v779
        %v812 = vmul.f32 %v796, %v780
        %v813 = vmul.f32 %v797, %v781
        %v814 = vmul.f32 %v798, 1.442695
        %v815 = vpow.pop %v814
        %v816 = vmul.f32 %v799, 1.442695
        %v817 = vpow.pop %v816
        %v818 = vmul.f32 %v800, 1.442695
        %v819 = vpow.pop %v818
        %v820 = vmul.f32 %v801, 1.442695
        %v821 = vpow.pop %v820
        %v822 = vmul.f32 %v802, 1.442695
        %v823 = vpow.pop %v822
        %v824 = vmul.f32 %v803, 1.442695
        %v825 = vpow.pop %v824
        %v826 = vmul.f32 %v804, 1.442695
        %v827 = vpow.pop %v826
        %v828 = vmul.f32 %v805, 1.442695
        %v829 = vpow.pop %v828
        %v830 = vmul.f32 %v806, 1.442695
        %v831 = vpow.pop %v830
        %v832 = vmul.f32 %v807, 1.442695
        %v833 = vpow.pop %v832
        %v834 = vmul.f32 %v808, 1.442695
        %v835 = vpow.pop %v834
        %v836 = vmul.f32 %v809, 1.442695
        %v837 = vpow.pop %v836
        %v838 = vmul.f32 %v810, 1.442695
        %v839 = vpow.pop %v838
        %v840 = vmul.f32 %v811, 1.442695
        %v841 = vpow.pop %v840
        %v842 = vmul.f32 %v812, 1.442695
        %v843 = vpow.pop %v842
        %v844 = vmul.f32 %v813, 1.442695
        %v845 = vpow.pop %v844
        %v846 = vadd.f32 %v815, %v823
        %v847 = vadd.f32 %v846, %v831
        %v848 = vadd.f32 %v847, %v839
        %v849 = vrot.slane %v848, 4
        %v850 = vadd.f32 %v848, %v849
        %v851 = vrot.slane %v850, 2
        %v852 = vadd.f32 %v850, %v851
        %v853 = vrot.slane %v852, 1
        %v854 = vadd.f32 %v852, %v853
        %v855 = vadd.f32 %v817, %v825
        %v856 = vadd.f32 %v855, %v833
        %v857 = vadd.f32 %v856, %v841
        %v858 = vrot.slane %v857, 4
        %v859 = vadd.f32 %v857, %v858
        %v860 = vrot.slane %v859, 2
        %v861 = vadd.f32 %v859, %v860
        %v862 = vrot.slane %v861, 1
        %v863 = vadd.f32 %v861, %v862
        %v864 = vadd.f32 %v819, %v827
        %v865 = vadd.f32 %v864, %v835
        %v866 = vadd.f32 %v865, %v843
        %v867 = vrot.slane %v866, 4
        %v868 = vadd.f32 %v866, %v867
        %v869 = vrot.slane %v868, 2
        %v870 = vadd.f32 %v868, %v869
        %v871 = vrot.slane %v870, 1
        %v872 = vadd.f32 %v870, %v871
        %v873 = vadd.f32 %v821, %v829
        %v874 = vadd.f32 %v873, %v837
        %v875 = vadd.f32 %v874, %v845
        %v876 = vrot.slane %v875, 4
        %v877 = vadd.f32 %v875, %v876
        %v878 = vrot.slane %v877, 2
        %v879 = vadd.f32 %v877, %v878
        %v880 = vrot.slane %v879, 1
        %v881 = vadd.f32 %v879, %v880
        %v882 = vrcp.pop %v854
        %v883 = vrcp.pop %v863
        %v884 = vrcp.pop %v872
        %v885 = vrcp.pop %v881
        %v886 = vmul.f32 %v815, %v882
        %v887 = vmul.f32 %v817, %v883
        %v888 = vmul.f32 %v819, %v884
        %v889 = vmul.f32 %v821, %v885
        %v890 = vmul.f32 %v823, %v882
        %v891 = vmul.f32 %v825, %v883
        %v892 = vmul.f32 %v827, %v884
        %v893 = vmul.f32 %v829, %v885
        %v894 = vmul.f32 %v831, %v882
        %v895 = vmul.f32 %v833, %v883
        %v896 = vmul.f32 %v835, %v884
        %v897 = vmul.f32 %v837, %v885
        %v898 = vmul.f32 %v839, %v882
        %v899 = vmul.f32 %v841, %v883
        %v900 = vmul.f32 %v843, %v884
        %v901 = vmul.f32 %v845, %v885
        %v902 = vpack.c.bf16 %v733, %v729
        %v903 = vpack.c.bf16 %v734, %v730
        %v904 = vpack.c.bf16 %v735, %v731
        %v905 = vpack.c.bf16 %v736, %v732
        %v906 = vpack.c.bf16 %v741, %v737
        %v907 = vpack.c.bf16 %v742, %v738
        %v908 = vpack.c.bf16 %v743, %v739
        %v909 = vpack.c.bf16 %v744, %v740
        %v910 = vpack.c.bf16 %v890, %v886
        %v911 = vpack.c.bf16 %v891, %v887
        %v912 = vpack.c.bf16 %v892, %v888
        %v913 = vpack.c.bf16 %v893, %v889
        %v914 = vpack.c.bf16 %v898, %v894
        %v915 = vpack.c.bf16 %v899, %v895
        %v916 = vpack.c.bf16 %v900, %v896
        %v917 = vpack.c.bf16 %v901, %v897
        %918 = vmatprep.subr.bf16.mxu0 %v911
        %919 = vmatpush1.bf16.xpose.msra.mxu0 %v910
        %920 = vmatprep.subr.bf16.mxu0 %v915
        %921 = vmatpush1.bf16.xpose.msra.mxu0 %v914
        %922 = vmatprep.subr.bf16.mxu0 0
        %923 = vmatpush1.bf16.xpose.msra.mxu0 0
        %924 = vmatprep.subr.bf16.mxu0 0
        %925 = vmatpush1.bf16.xpose.msra.mxu0 0
        %926 = vmatprep.subr.bf16.mxu0 0
        %927 = vmatpush1.bf16.xpose.msra.mxu0 0
        %928 = vmatprep.subr.bf16.mxu0 0
        %929 = vmatpush1.bf16.xpose.msra.mxu0 0
        %930 = vmatprep.subr.bf16.mxu0 0
        %931 = vmatpush1.bf16.xpose.msra.mxu0 0
        %932 = vmatprep.subr.bf16.mxu0 0
        %933 = vmatpush1.bf16.xpose.msra.mxu0 0
        %934 = vmatprep.subr.bf16.mxu0 0
        %935 = vmatpush1.bf16.xpose.msra.mxu0 0
        %936 = vmatprep.subr.bf16.mxu0 0
        %937 = vmatpush1.bf16.xpose.msra.mxu0 0
        %938 = vmatprep.subr.bf16.mxu0 0
        %939 = vmatpush1.bf16.xpose.msra.mxu0 0
        %940 = vmatprep.subr.bf16.mxu0 0
        %941 = vmatpush1.bf16.xpose.msra.mxu0 0
        %942 = vmatprep.subr.bf16.mxu0 0
        %943 = vmatpush1.bf16.xpose.msra.mxu0 0
        %944 = vmatprep.subr.bf16.mxu0 0
        %945 = vmatpush1.bf16.xpose.msra.mxu0 0
        %946 = vmatprep.subr.bf16.mxu0 0
        %947 = vmatpush1.bf16.xpose.msra.mxu0 0
        %948 = vmatprep.subr.bf16.mxu0 0
        %949 = vmatpush1.bf16.xpose.msra.mxu0 0
        %950 = vmatprep.mubr.bf16.mxu0 %v903
        %951 = vmatmul.mubr.bf16.gmra.mrb[0].mxu0 %v902
        %v952 = vpop.f32.mrb[0].mxu0
        %v953 = vadd.f32 0.0, %v952
        %v954 = vpop.f32.mrb[0].mxu0
        %v955 = vpop.f32.mrb[0].mxu0
        %v956 = vadd.f32 0.0, %v955
        %v957 = vpop.f32.mrb[0].mxu0
        %958 = vmatprep.mubr.bf16.mxu0 %v907
        %959 = vmatmul.mubr.bf16.gmra.mrb[0].mxu0 %v906
        %v960 = vpop.f32.mrb[0].mxu0
        %v961 = vadd.f32 0.0, %v960
        %v962 = vpop.f32.mrb[0].mxu0
        %v963 = vpop.f32.mrb[0].mxu0
        %v964 = vadd.f32 0.0, %v963
        %v965 = vpop.f32.mrb[0].mxu0
        %966 = vdwg.mxu0
        %967 = vmatprep.subr.bf16.mxu0 %v913
        %968 = vmatpush1.bf16.xpose.msra.mxu0 %v912
        %969 = vmatprep.subr.bf16.mxu0 %v917
        %970 = vmatpush1.bf16.xpose.msra.mxu0 %v916
        %971 = vmatprep.subr.bf16.mxu0 0
        %972 = vmatpush1.bf16.xpose.msra.mxu0 0
        %973 = vmatprep.subr.bf16.mxu0 0
        %974 = vmatpush1.bf16.xpose.msra.mxu0 0
        %975 = vmatprep.subr.bf16.mxu0 0
        %976 = vmatpush1.bf16.xpose.msra.mxu0 0
        %977 = vmatprep.subr.bf16.mxu0 0
        %978 = vmatpush1.bf16.xpose.msra.mxu0 0
        %979 = vmatprep.subr.bf16.mxu0 0
        %980 = vmatpush1.bf16.xpose.msra.mxu0 0
        %981 = vmatprep.subr.bf16.mxu0 0
        %982 = vmatpush1.bf16.xpose.msra.mxu0 0
        %983 = vmatprep.subr.bf16.mxu0 0
        %984 = vmatpush1.bf16.xpose.msra.mxu0 0
        %985 = vmatprep.subr.bf16.mxu0 0
        %986 = vmatpush1.bf16.xpose.msra.mxu0 0
        %987 = vmatprep.subr.bf16.mxu0 0
        %988 = vmatpush1.bf16.xpose.msra.mxu0 0
        %989 = vmatprep.subr.bf16.mxu0 0
        %990 = vmatpush1.bf16.xpose.msra.mxu0 0
        %991 = vmatprep.subr.bf16.mxu0 0
        %992 = vmatpush1.bf16.xpose.msra.mxu0 0
        %993 = vmatprep.subr.bf16.mxu0 0
        %994 = vmatpush1.bf16.xpose.msra.mxu0 0
        %995 = vmatprep.subr.bf16.mxu0 0
        %996 = vmatpush1.bf16.xpose.msra.mxu0 0
        %997 = vmatprep.subr.bf16.mxu0 0
        %998 = vmatpush1.bf16.xpose.msra.mxu0 0
        %999 = vmatprep.mubr.bf16.mxu0 %v905
        %1000 = vmatmul.mubr.bf16.gmra.mrb[0].mxu0 %v904
        %v1001 = vpop.f32.mrb[0].mxu0
        %v1002 = vadd.f32 %v953, %v1001
        %v1003 = vpop.f32.mrb[0].mxu0
        %v1004 = vpop.f32.mrb[0].mxu0
        %v1005 = vadd.f32 %v956, %v1004
        %v1006 = vpop.f32.mrb[0].mxu0
        %1007 = vmatprep.mubr.bf16.mxu0 %v909
        %1008 = vmatmul.mubr.bf16.gmra.mrb[0].mxu0 %v908
        %v1009 = vpop.f32.mrb[0].mxu0
        %v1010 = vadd.f32 %v961, %v1009
        %v1011 = vpop.f32.mrb[0].mxu0
        %v1012 = vpop.f32.mrb[0].mxu0
        %v1013 = vadd.f32 %v964, %v1012
        %v1014 = vpop.f32.mrb[0].mxu0
        %1015 = vdwg.mxu0
        %1016 = vmatprep.subr.bf16.mxu0 %v573
        %1017 = vmatpush1.bf16.xpose.msra.mxu0 %v572
        %1018 = vmatprep.subr.bf16.mxu0 %v577
        %1019 = vmatpush1.bf16.xpose.msra.mxu0 %v576
        %1020 = vmatprep.subr.bf16.mxu0 0
        %1021 = vmatpush1.bf16.xpose.msra.mxu0 0
        %1022 = vmatprep.subr.bf16.mxu0 0
        %1023 = vmatpush1.bf16.xpose.msra.mxu0 0
        %1024 = vmatprep.subr.bf16.mxu0 0
        %1025 = vmatpush1.bf16.xpose.msra.mxu0 0
        %1026 = vmatprep.subr.bf16.mxu0 0
        %1027 = vmatpush1.bf16.xpose.msra.mxu0 0
        %1028 = vmatprep.subr.bf16.mxu0 0
        %1029 = vmatpush1.bf16.xpose.msra.mxu0 0
        %1030 = vmatprep.subr.bf16.mxu0 0
        %1031 = vmatpush1.bf16.xpose.msra.mxu0 0
        %1032 = vmatprep.subr.bf16.mxu0 0
        %1033 = vmatpush1.bf16.xpose.msra.mxu0 0
        %1034 = vmatprep.subr.bf16.mxu0 0
        %1035 = vmatpush1.bf16.xpose.msra.mxu0 0
        %1036 = vmatprep.subr.bf16.mxu0 0
        %1037 = vmatpush1.bf16.xpose.msra.mxu0 0
        %1038 = vmatprep.subr.bf16.mxu0 0
        %1039 = vmatpush1.bf16.xpose.msra.mxu0 0
        %1040 = vmatprep.subr.bf16.mxu0 0
        %1041 = vmatpush1.bf16.xpose.msra.mxu0 0
        %1042 = vmatprep.subr.bf16.mxu0 0
        %1043 = vmatpush1.bf16.xpose.msra.mxu0 0
        %1044 = vmatprep.subr.bf16.mxu0 0
        %1045 = vmatpush1.bf16.xpose.msra.mxu0 0
        %1046 = vmatprep.subr.bf16.mxu0 0
        %1047 = vmatpush1.bf16.xpose.msra.mxu0 0
        %1048 = vmatprep.mubr.bf16.mxu0 %v565
        %1049 = vmatmul.mubr.bf16.gmra.mrb[0].mxu0 %v564
        %v1050 = vpop.f32.mrb[0].mxu0
        %v1051 = vadd.f32 %v1002, %v1050
        %v1052 = vpop.f32.mrb[0].mxu0
        %v1053 = vpop.f32.mrb[0].mxu0
        %v1054 = vadd.f32 %v1005, %v1053
        %v1055 = vpop.f32.mrb[0].mxu0
        %1056 = vmatprep.mubr.bf16.mxu0 %v569
        %1057 = vmatmul.mubr.bf16.gmra.mrb[0].mxu0 %v568
        %v1058 = vpop.f32.mrb[0].mxu0
        %v1059 = vadd.f32 %v1010, %v1058
        %v1060 = vpop.f32.mrb[0].mxu0
        %v1061 = vpop.f32.mrb[0].mxu0
        %v1062 = vadd.f32 %v1013, %v1061
        %v1063 = vpop.f32.mrb[0].mxu0
        %1064 = vdwg.mxu0
        %1065 = vmatprep.subr.bf16.mxu0 %v575
        %1066 = vmatpush1.bf16.xpose.msra.mxu0 %v574
        %1067 = vmatprep.subr.bf16.mxu0 %v579
        %1068 = vmatpush1.bf16.xpose.msra.mxu0 %v578
        %1069 = vmatprep.subr.bf16.mxu0 0
        %1070 = vmatpush1.bf16.xpose.msra.mxu0 0
        %1071 = vmatprep.subr.bf16.mxu0 0
        %1072 = vmatpush1.bf16.xpose.msra.mxu0 0
        %1073 = vmatprep.subr.bf16.mxu0 0
        %1074 = vmatpush1.bf16.xpose.msra.mxu0 0
        %1075 = vmatprep.subr.bf16.mxu0 0
        %1076 = vmatpush1.bf16.xpose.msra.mxu0 0
        %1077 = vmatprep.subr.bf16.mxu0 0
        %1078 = vmatpush1.bf16.xpose.msra.mxu0 0
        %1079 = vmatprep.subr.bf16.mxu0 0
        %1080 = vmatpush1.bf16.xpose.msra.mxu0 0
        %1081 = vmatprep.subr.bf16.mxu0 0
        %1082 = vmatpush1.bf16.xpose.msra.mxu0 0
        %1083 = vmatprep.subr.bf16.mxu0 0
        %1084 = vmatpush1.bf16.xpose.msra.mxu0 0
        %1085 = vmatprep.subr.bf16.mxu0 0
        %1086 = vmatpush1.bf16.xpose.msra.mxu0 0
        %1087 = vmatprep.subr.bf16.mxu0 0
        %1088 = vmatpush1.bf16.xpose.msra.mxu0 0
        %1089 = vmatprep.subr.bf16.mxu0 0
        %1090 = vmatpush1.bf16.xpose.msra.mxu0 0
        %1091 = vmatprep.subr.bf16.mxu0 0
        %1092 = vmatpush1.bf16.xpose.msra.mxu0 0
        %1093 = vmatprep.subr.bf16.mxu0 0
        %1094 = vmatpush1.bf16.xpose.msra.mxu0 0
        %1095 = vmatprep.subr.bf16.mxu0 0
        %1096 = vmatpush1.bf16.xpose.msra.mxu0 0
        %1097 = vmatprep.mubr.bf16.mxu0 %v567
        %1098 = vmatmul.mubr.bf16.gmra.mrb[0].mxu0 %v566
        %v1099 = vpop.f32.mrb[0].mxu0
        %v1100 = vadd.f32 %v1051, %v1099
        %v1101 = vpop.f32.mrb[0].mxu0
        %v1102 = vpop.f32.mrb[0].mxu0
        %v1103 = vadd.f32 %v1054, %v1102
        %v1104 = vpop.f32.mrb[0].mxu0
        %1105 = vmatprep.mubr.bf16.mxu0 %v571
        %1106 = vmatmul.mubr.bf16.gmra.mrb[0].mxu0 %v570
        %v1107 = vpop.f32.mrb[0].mxu0
        %v1108 = vadd.f32 %v1059, %v1107
        %v1109 = vpop.f32.mrb[0].mxu0
        %v1110 = vpop.f32.mrb[0].mxu0
        %v1111 = vadd.f32 %v1062, %v1110
        %v1112 = vpop.f32.mrb[0].mxu0
        %1113 = vdwg.mxu0
        %v1114 = vld [vmem:[#allocation2] sm:$0xff]
        %v1115 = vld [vmem:[#allocation2 + $0x8] sm:$0xff]
        %v1116 = vld [vmem:[#allocation2 + $0x10] sm:$0xff]
        %v1117 = vld [vmem:[#allocation2 + $0x18] sm:$0xff]
        %v1118 = vadd.f32 %v1114, %v1100
        %v1119 = vadd.f32 %v1115, %v1103
        %v1120 = vadd.f32 %v1116, %v1108
        %v1121 = vadd.f32 %v1117, %v1111
        %vm1122 = vcmask 261120
        %1123 = vst.msk [vmem:[#allocation2] sm:$0xff] %vm1122, %v1118
        %1124 = vst.msk [vmem:[#allocation2 + $0x8] sm:$0xff] %vm1122, %v1119
        %1125 = vst.msk [vmem:[#allocation2 + $0x10] sm:$0xff] %vm1122, %v1120
        %1126 = vst.msk [vmem:[#allocation2 + $0x18] sm:$0xff] %vm1122, %v1121
        // Predicated region
        $region41: #{tpu_custom_call.1} parent=27 // pred_check
          %p1127 = pneg %p218
        $region42: #{tpu_custom_call.1} parent=27 // pred_check_branch
          %1129 = sbr.rel (%p1127) target = $region44
        $region43: #{tpu_custom_call.1} parent=27 // pred_region
          %v1130 = vld [vmem:[#allocation2] sm:$0xff]
          %v1131 = vld [vmem:[#allocation2 + $0x8] sm:$0xff]
          %v1132 = vld [vmem:[#allocation2 + $0x10] sm:$0xff]
          %v1133 = vld [vmem:[#allocation2 + $0x18] sm:$0xff]
          %v1134 = vmul.f32 %v1130, 0.0009765625
          %v1135 = vmul.f32 %v1131, 0.0009765625
          %v1136 = vmul.f32 %v1132, 0.0009765625
          %v1137 = vmul.f32 %v1133, 0.0009765625
          %v1138 = vsel %vm1122, %v1134, 0.0
          %1139 = vadd.xlane.f32.xlu0 %v1138
          %v1140 = vpop.xlane.xlu0 %1139
          %v1141 = vsel %vm1122, %v1135, 0.0
          %1142 = vadd.xlane.f32.xlu0 %v1141
          %v1143 = vpop.xlane.xlu0 %1142
          %v1144 = vsel %vm1122, %v1136, 0.0
          %1145 = vadd.xlane.f32.xlu0 %v1144
          %v1146 = vpop.xlane.xlu0 %1145
          %v1147 = vsel %vm1122, %v1137, 0.0
          %1148 = vadd.xlane.f32.xlu0 %v1147
          %v1149 = vpop.xlane.xlu0 %1148
          %v1150 = vadd.f32 %v1138, %v1141
          %v1151 = vadd.f32 %v1150, %v1144
          %v1152 = vadd.f32 %v1151, %v1147
          %v1153 = vrot.slane %v1152, 4
          %v1154 = vadd.f32 %v1152, %v1153
          %v1155 = vrot.slane %v1154, 2
          %v1156 = vadd.f32 %v1154, %v1155
          %v1157 = vrot.slane %v1156, 1
          %v1158 = vadd.f32 %v1156, %v1157
          %v1159 = vmul.f32 %v1140, %v1158
          %v1160 = vmul.f32 %v1143, %v1158
          %v1161 = vmul.f32 %v1146, %v1158
          %v1162 = vmul.f32 %v1149, %v1158
          %v1163 = vadd.f32 %v1159, 1e-06
          %v1164 = vadd.f32 %v1160, 1e-06
          %v1165 = vadd.f32 %v1161, 1e-06
          %v1166 = vadd.f32 %v1162, 1e-06
          %v1167 = vrcp.pop %v1163
          %v1168 = vmul.f32 %v1134, %v1167
          %v1169 = vrcp.pop %v1164
          %v1170 = vmul.f32 %v1135, %v1169
          %v1171 = vrcp.pop %v1165
          %v1172 = vmul.f32 %v1136, %v1171
          %v1173 = vrcp.pop %v1166
          %v1174 = vmul.f32 %v1137, %v1173
          %v1175 = vadd.f32 %v1168, 1e-06
          %v1176 = vadd.f32 %v1170, 1e-06
          %v1177 = vadd.f32 %v1172, 1e-06
          %v1178 = vadd.f32 %v1174, 1e-06
          %v1179 = vlog2.pop %v1175
          %v1180 = vmul.f32 %v1179, 0.6931472
          %v1181 = vlog2.pop %v1176
          %v1182 = vmul.f32 %v1181, 0.6931472
          %v1183 = vlog2.pop %v1177
          %v1184 = vmul.f32 %v1183, 0.6931472
          %v1185 = vlog2.pop %v1178
          %v1186 = vmul.f32 %v1185, 0.6931472
          %v1187 = vmul.f32 %v1134, %v1180
          %v1188 = vmul.f32 %v1135, %v1182
          %v1189 = vmul.f32 %v1136, %v1184
          %v1190 = vmul.f32 %v1137, %v1186
          %v1191 = vsel %vm1122, %v1187, 0.0
          %v1192 = vsel %vm1122, %v1188, 0.0
          %v1193 = vadd.f32 %v1191, %v1192
          %v1194 = vsel %vm1122, %v1189, 0.0
          %v1195 = vadd.f32 %v1193, %v1194
          %v1196 = vsel %vm1122, %v1190, 0.0
          %v1197 = vadd.f32 %v1195, %v1196
          %v1198 = vrot.slane %v1197, 4
          %v1199 = vadd.f32 %v1197, %v1198
          %v1200 = vrot.slane %v1199, 2
          %v1201 = vadd.f32 %v1199, %v1200
          %v1202 = vrot.slane %v1201, 1
          %v1203 = vadd.f32 %v1201, %v1202
          %vm1204 = vcmask 253952
          %1205 = vst.msk [vmem:[%s216] sm:$0x1] %vm1204, %v1203
        $region44: #{tpu_custom_call.1} parent=27 // pred_fallthru
          _
        %s1206 = sand.u32 %s98, 1
        %s1207 = scalar_lea.sflag [#allocation5], %s1206
        %s1208 = sand.u32 %s98, 1
        %s1209 = scalar_lea.vmem [#allocation8], %s1208
        // Predicated region
        $region45: #{tpu_custom_call.1} parent=27 // pred_check
          %p1210 = pneg %p108
        $region46: #{tpu_custom_call.1} parent=27 // pred_check_branch
          %1212 = sbr.rel (%p1210) target = $region48
        $region47: #{tpu_custom_call.1} parent=27 // pred_region
          %s1214 = ssub.s32 16, 16
          %1215 = vsyncadd %s1207, %s1214
          %s1216 = smul.addr %s26, 16
          %s1217 = scalar_lea.hbm %s2, %s1216
          %s1219 = sshll.u32 %s1209, 4
          %s1220 = int_to_ptr.vmem [resolvable:$true] %s1219
          %1222 = dma.vmem_to_hbm [thread:$0]  %s1220, 16, %s1217, %s1207
        $region48: #{tpu_custom_call.1} parent=27 // pred_fallthru
          _
      $region28: #{tpu_custom_call.1} parent=5 // pred_fallthru
        _
      %p1223 = scmp.le.s32.totalorder 2, %s17
      // Predicated region
      $region49: #{tpu_custom_call.1} parent=5 // pred_check
        %p1224 = pneg %p1223
      $region50: #{tpu_custom_call.1} parent=5 // pred_check_branch
        %1226 = sbr.rel (%p1224) target = $region52
      $region51: #{tpu_custom_call.1} parent=5 // pred_region
        %s1227 = ssub.s32 %s17, 2
        // Predicated region
        $region53: #{tpu_custom_call.1} parent=51 // pred_check
          %p1228 = pneg %p114
        $region54: #{tpu_custom_call.1} parent=51 // pred_check_branch
          %1230 = sbr.rel (%p1228) target = $region56
        $region55: #{tpu_custom_call.1} parent=51 // pred_region
          %s1231 = sand.u32 %s99, 1
          %s1232 = scalar_lea.sflag [#allocation5], %s1231
          %s1233 = sand.u32 %s99, 1
          %s1234 = scalar_lea.vmem [#allocation8], %s1233
          %1235 = dma.done %s1232, 16
        $region56: #{tpu_custom_call.1} parent=51 // pred_fallthru
          _
      $region52: #{tpu_custom_call.1} parent=5 // pred_fallthru
        _
    $region6: #{tpu_custom_call.1} parent=1 // loop_footer
      %s21 = sadd.s32 1, %s17
    $region7: #{tpu_custom_call.1} parent=1 // loop_footer_branch
      %16 = sbr.rel target = $region3
    $region8: #{tpu_custom_call.1} parent=1 // loop_exit
      _
    %1236 = vsyncpa [#allocation4], 1
    %s1237 = scalar_lea.sflag [#allocation4], 1
    %1238 = vsyncpa %s1237, 1
    %1239 = vsyncpa [#allocation7], 1
    %s1240 = scalar_lea.sflag [#allocation7], 1
    %1241 = vsyncpa %s1240, 1
    %1242 = vsyncpa [#allocation5], 1
    %s1243 = scalar_lea.sflag [#allocation5], 1
    %1244 = vsyncpa %s1243, 1

</llo_original>
